<compile_context>
chip_gen: v7x
topology: tpu7x:2x2x1
jax: 0.10.0
libtpu: 0.0.40
codegen_flags: <defaults>
</compile_context>

<pallas_src>
import functools

import jax
import jax.numpy as jnp
from jax.experimental import pallas as pl
from jax.experimental.pallas import tpu as pltpu

SMOOTH_NR = 1e-5
SMOOTH_DR = 1e-5


def _round_up(x, m):
    return ((x + m - 1) // m) * m


def _task2_loss_kernel(pred_ref, tgt_ref, out_ref,
                       acc_tp, acc_p, acc_t, acc_ce,
                       *, c, inv_nhw, inv_ncm1):
    """Grid = (N, num_hw_tiles).

    pred_ref / tgt_ref : (1, C, TILE) blocks of the (N, C, HW_pad) inputs.
    out_ref            : (1, 1, 1) per-batch partial loss (summed in wrapper).
    acc_*              : VMEM lane-partial accumulators; the XLU cross-lane
                         reduction happens only once, in the finalize block.
    """
    k = pl.program_id(1)

    @pl.when(k == 0)
    def _init():
        acc_tp[...] = jnp.zeros_like(acc_tp)
        acc_p[...] = jnp.zeros_like(acc_p)
        acc_t[...] = jnp.zeros_like(acc_t)
        acc_ce[...] = jnp.zeros_like(acc_ce)

    pred = pred_ref[0].astype(jnp.float32)   # (C, TILE)
    tgt = tgt_ref[0].astype(jnp.float32)     # (C, TILE)

    # Lane-wise partial sums (pure VPU adds).
    acc_tp[...] += tgt * pred                # Dice "inter" + CE sum(t*p)
    acc_p[...] += pred                       # Dice pred_o
    acc_t[...] += tgt                        # Dice ground_o

    # Per-pixel log-sum-exp over the class (sublane) axis for cross-entropy:
    #   -sum_c t*log_softmax(p) = LSE * sum_c(t) - sum_c(t * p)
    m = jnp.max(pred, axis=0, keepdims=True)                              # (1, TILE)
    lse = m + jnp.log(jnp.sum(jnp.exp(pred - m), axis=0, keepdims=True))  # (1, TILE)
    tsum = jnp.sum(tgt, axis=0, keepdims=True)                            # (1, TILE)
    acc_ce[...] += lse * tsum

    @pl.when(k == pl.num_programs(1) - 1)
    def _finalize():
        inter = jnp.sum(acc_tp[...], axis=1, keepdims=True)       # (C, 1)
        pred_o = jnp.sum(acc_p[...], axis=1, keepdims=True)       # (C, 1)
        ground_o = jnp.sum(acc_t[...], axis=1, keepdims=True)     # (C, 1)

        # DiceLoss (no activation on pred, MONAI smooth defaults).
        dice = 1.0 - (2.0 * inter + SMOOTH_NR) / (ground_o + pred_o + SMOOTH_DR)
        # include_background=False: mask out channel 0 (no unaligned slice).
        ch = jax.lax.broadcasted_iota(jnp.int32, (c, 1), 0)
        dice_fg_sum = jnp.sum(jnp.where(ch != 0, dice, 0.0))

        ce_sum = jnp.sum(acc_ce[...]) - jnp.sum(inter)

        loss_i = 0.5 * dice_fg_sum * inv_ncm1 + 0.5 * ce_sum * inv_nhw
        out_ref[...] = jnp.broadcast_to(loss_i, (1, 1, 1)).astype(out_ref.dtype)


def task2_loss(pred, target, *, tile_hw=2048):
    """pred, target: (N, C, H, W) arrays (same shape). Returns scalar loss."""
    n, c, h, w = pred.shape
    hw = h * w

    # Keep inputs in their original dtype over HBM (halves traffic for bf16);
    # the kernel casts to f32 in-vreg after the load.
    pred3 = pred.reshape(n, c, hw)
    tgt3 = target.reshape(n, c, hw)

    # HW tile: multiple of 128 lanes, sized well under VMEM even on v7x
    # (2 inputs x 2 pipeline buffers x 8 padded sublanes x tile, plus scratch).
    tile = min(tile_hw, _round_up(hw, 128))
    hw_pad = _round_up(hw, tile)
    if hw_pad != hw:
        # Zero padding contributes nothing to any partial sum (tgt=0, pred=0,
        # and the CE term is weighted by sum_c(tgt)=0 on padded pixels).
        pad = ((0, 0), (0, 0), (0, hw_pad - hw))
        pred3 = jnp.pad(pred3, pad)
        tgt3 = jnp.pad(tgt3, pad)
    num_tiles = hw_pad // tile

    kernel = functools.partial(
        _task2_loss_kernel,
        c=c,
        inv_nhw=1.0 / float(n * hw),
        inv_ncm1=1.0 / float(n * (c - 1)),
    )

    partial = pl.pallas_call(
        kernel,
        out_shape=jax.ShapeDtypeStruct((n, 1, 1), jnp.float32),
        grid_spec=pltpu.PrefetchScalarGridSpec(
            num_scalar_prefetch=0,
            grid=(n, num_tiles),
            in_specs=[
                pl.BlockSpec((1, c, tile), lambda i, k: (i, 0, k)),
                pl.BlockSpec((1, c, tile), lambda i, k: (i, 0, k)),
            ],
            out_specs=pl.BlockSpec((1, 1, 1), lambda i, k: (i, 0, 0)),
            scratch_shapes=[
                pltpu.VMEM((c, tile), jnp.float32),   # acc_tp (inter)
                pltpu.VMEM((c, tile), jnp.float32),   # acc_p  (pred_o)
                pltpu.VMEM((c, tile), jnp.float32),   # acc_t  (ground_o)
                pltpu.VMEM((1, tile), jnp.float32),   # acc_ce (lse * sum_c t)
            ],
        ),
        compiler_params=pltpu.CompilerParams(
            # Batch axis is independent (sharded across TensorCores on
            # multi-core chips); the HW axis carries the accumulators.
            dimension_semantics=("parallel", "arbitrary"),
        ),
    )(pred3, tgt3)

    # Tiny final combine: per-batch partials already carry the 1/(N*HW),
    # 1/(N*(C-1)) and 0.5 factors, so the total loss is just their sum.
    return jnp.sum(partial)


def _reference(pred, target):
    """Pure-JAX reference mirroring the torch semantics."""
    n, c, h, w = pred.shape
    logp = jax.nn.log_softmax(pred.astype(jnp.float32), axis=1)
    ce = -jnp.sum(target * logp) / (n * h * w)
    p = pred[:, 1:].reshape(n, c - 1, -1).astype(jnp.float32)
    t = target[:, 1:].reshape(n, c - 1, -1).astype(jnp.float32)
    inter = jnp.sum(t * p, axis=2)
    denom = jnp.sum(t, axis=2) + jnp.sum(p, axis=2)
    dice = 1.0 - (2.0 * inter + SMOOTH_NR) / (denom + SMOOTH_DR)
    return 0.5 * jnp.mean(dice) + 0.5 * ce


if __name__ == "__main__":
    key = jax.random.PRNGKey(0)
    k1, k2 = jax.random.split(key)

    N, C, H, W = 2, 4, 16, 16
    pred = jax.random.normal(k1, (N, C, H, W), dtype=jnp.float32)
    labels = jax.random.randint(k2, (N, H, W), 0, C)
    # One-hot probability target (same tensor feeds both Dice and CrossEntropy).
    target = jax.nn.one_hot(labels, C, axis=1, dtype=jnp.float32)  # (N, C, H, W)

    loss = task2_loss(pred, target)
    jax.block_until_ready(loss)

    ref = _reference(pred, target)
    assert jnp.allclose(loss, ref, atol=1e-5, rtol=1e-5), (float(loss), float(ref))

    print("KERNEL_OK")
</pallas_src>

<mosaic_0001>
module attributes {stable_mosaic.version = 11 : i64} {
  func.func @_task2_loss_kernel(%arg0: i32, %arg1: i32, %arg2: memref<1x4x256xf32, #tpu.memory_space<vmem>>, %arg3: memref<1x4x256xf32, #tpu.memory_space<vmem>>, %arg4: memref<1x1x1xf32, #tpu.memory_space<vmem>>, %arg5: memref<4x256xf32, #tpu.memory_space<vmem>>, %arg6: memref<4x256xf32, #tpu.memory_space<vmem>>, %arg7: memref<4x256xf32, #tpu.memory_space<vmem>>, %arg8: memref<1x256xf32, #tpu.memory_space<vmem>>) attributes {dimension_semantics = [#tpu.dimension_semantics<parallel>, #tpu.dimension_semantics<arbitrary>], iteration_bounds = array<i64: 2, 1>, scalar_prefetch = 0 : i64, scratch_operands = 4 : i64, tpu.core_type = #tpu.core_type<tc>, window_params = [{transform_indices = @transform_0, window_bounds = array<i64: 1, 4, 256>}, {transform_indices = @transform_1, window_bounds = array<i64: 1, 4, 256>}, {transform_indices = @transform_2, window_bounds = array<i64: 1, 1, 1>}]} {
    %c0_i32 = arith.constant 0 : i32
    %0 = arith.cmpi eq, %arg1, %c0_i32 : i32
    %1 = arith.extui %0 : i1 to i32
    %c0_i32_0 = arith.constant 0 : i32
    %2 = arith.cmpi ne, %1, %c0_i32_0 : i32
    scf.if %2 {
      %cst_26 = arith.constant 0.000000e+00 : f32
      %35 = vector.broadcast %cst_26 : f32 to vector<4x256xf32>
      %c0_27 = arith.constant 0 : index
      %c0_28 = arith.constant 0 : index
      %36 = vector.load %arg5[%c0_27, %c0_28] : memref<4x256xf32, #tpu.memory_space<vmem>>, vector<4x256xf32>
      tpu.vector_store %arg5[%c0_27, %c0_28], %35 {strides = array<i32>} : memref<4x256xf32, #tpu.memory_space<vmem>>, vector<4x256xf32>,
      %cst_29 = arith.constant 0.000000e+00 : f32
      %37 = vector.broadcast %cst_29 : f32 to vector<4x256xf32>
      %c0_30 = arith.constant 0 : index
      %c0_31 = arith.constant 0 : index
      %38 = vector.load %arg6[%c0_30, %c0_31] : memref<4x256xf32, #tpu.memory_space<vmem>>, vector<4x256xf32>
      tpu.vector_store %arg6[%c0_30, %c0_31], %37 {strides = array<i32>} : memref<4x256xf32, #tpu.memory_space<vmem>>, vector<4x256xf32>,
      %cst_32 = arith.constant 0.000000e+00 : f32
      %39 = vector.broadcast %cst_32 : f32 to vector<4x256xf32>
      %c0_33 = arith.constant 0 : index
      %c0_34 = arith.constant 0 : index
      %40 = vector.load %arg7[%c0_33, %c0_34] : memref<4x256xf32, #tpu.memory_space<vmem>>, vector<4x256xf32>
      tpu.vector_store %arg7[%c0_33, %c0_34], %39 {strides = array<i32>} : memref<4x256xf32, #tpu.memory_space<vmem>>, vector<4x256xf32>,
      %cst_35 = arith.constant 0.000000e+00 : f32
      %41 = vector.broadcast %cst_35 : f32 to vector<1x256xf32>
      %c0_36 = arith.constant 0 : index
      %c0_37 = arith.constant 0 : index
      %42 = vector.load %arg8[%c0_36, %c0_37] : memref<1x256xf32, #tpu.memory_space<vmem>>, vector<1x256xf32>
      tpu.vector_store %arg8[%c0_36, %c0_37], %41 {strides = array<i32>} : memref<1x256xf32, #tpu.memory_space<vmem>>, vector<1x256xf32>,
    } else {
    }
    %c0 = arith.constant 0 : index
    %c0_1 = arith.constant 0 : index
    %c0_2 = arith.constant 0 : index
    %3 = vector.load %arg2[%c0, %c0_1, %c0_2] : memref<1x4x256xf32, #tpu.memory_space<vmem>>, vector<1x4x256xf32>
    %4 = vector.shape_cast %3 : vector<1x4x256xf32> to vector<4x256xf32>
    %c0_3 = arith.constant 0 : index
    %c0_4 = arith.constant 0 : index
    %c0_5 = arith.constant 0 : index
    %5 = vector.load %arg3[%c0_3, %c0_4, %c0_5] : memref<1x4x256xf32, #tpu.memory_space<vmem>>, vector<1x4x256xf32>
    %6 = vector.shape_cast %5 : vector<1x4x256xf32> to vector<4x256xf32>
    %c0_6 = arith.constant 0 : index
    %c0_7 = arith.constant 0 : index
    %7 = vector.load %arg5[%c0_6, %c0_7] : memref<4x256xf32, #tpu.memory_space<vmem>>, vector<4x256xf32>
    %8 = arith.mulf %6, %4 : vector<4x256xf32>
    %9 = arith.addf %7, %8 : vector<4x256xf32>
    %c0_8 = arith.constant 0 : index
    %c0_9 = arith.constant 0 : index
    %10 = vector.load %arg5[%c0_8, %c0_9] : memref<4x256xf32, #tpu.memory_space<vmem>>, vector<4x256xf32>
    tpu.vector_store %arg5[%c0_8, %c0_9], %9 {strides = array<i32>} : memref<4x256xf32, #tpu.memory_space<vmem>>, vector<4x256xf32>,
    %c0_10 = arith.constant 0 : index
    %c0_11 = arith.constant 0 : index
    %11 = vector.load %arg6[%c0_10, %c0_11] : memref<4x256xf32, #tpu.memory_space<vmem>>, vector<4x256xf32>
    %12 = arith.addf %11, %4 : vector<4x256xf32>
    %c0_12 = arith.constant 0 : index
    %c0_13 = arith.constant 0 : index
    %13 = vector.load %arg6[%c0_12, %c0_13] : memref<4x256xf32, #tpu.memory_space<vmem>>, vector<4x256xf32>
    tpu.vector_store %arg6[%c0_12, %c0_13], %12 {strides = array<i32>} : memref<4x256xf32, #tpu.memory_space<vmem>>, vector<4x256xf32>,
    %c0_14 = arith.constant 0 : index
    %c0_15 = arith.constant 0 : index
    %14 = vector.load %arg7[%c0_14, %c0_15] : memref<4x256xf32, #tpu.memory_space<vmem>>, vector<4x256xf32>
    %15 = arith.addf %14, %6 : vector<4x256xf32>
    %c0_16 = arith.constant 0 : index
    %c0_17 = arith.constant 0 : index
    %16 = vector.load %arg7[%c0_16, %c0_17] : memref<4x256xf32, #tpu.memory_space<vmem>>, vector<4x256xf32>
    tpu.vector_store %arg7[%c0_16, %c0_17], %15 {strides = array<i32>} : memref<4x256xf32, #tpu.memory_space<vmem>>, vector<4x256xf32>,
    %cst = arith.constant dense<0xFF800000> : vector<256xf32>
    %17 = vector.multi_reduction <maximumf>, %4, %cst [0] : vector<4x256xf32> to vector<256xf32>
    %18 = vector.shape_cast %17 : vector<256xf32> to vector<1x256xf32>
    %19 = vector.broadcast %18 : vector<1x256xf32> to vector<4x256xf32>
    %20 = arith.subf %4, %19 : vector<4x256xf32>
    %21 = math.exp %20 : vector<4x256xf32>
    %cst_18 = arith.constant dense<0.000000e+00> : vector<256xf32>
    %22 = vector.multi_reduction <add>, %21, %cst_18 [0] : vector<4x256xf32> to vector<256xf32>
    %23 = vector.shape_cast %22 : vector<256xf32> to vector<1x256xf32>
    %24 = math.log %23 : vector<1x256xf32>
    %25 = arith.addf %18, %24 : vector<1x256xf32>
    %cst_19 = arith.constant dense<0.000000e+00> : vector<256xf32>
    %26 = vector.multi_reduction <add>, %6, %cst_19 [0] : vector<4x256xf32> to vector<256xf32>
    %27 = vector.shape_cast %26 : vector<256xf32> to vector<1x256xf32>
    %c0_20 = arith.constant 0 : index
    %c0_21 = arith.constant 0 : index
    %28 = vector.load %arg8[%c0_20, %c0_21] : memref<1x256xf32, #tpu.memory_space<vmem>>, vector<1x256xf32>
    %29 = arith.mulf %25, %27 : vector<1x256xf32>
    %30 = arith.addf %28, %29 : vector<1x256xf32>
    %c0_22 = arith.constant 0 : index
    %c0_23 = arith.constant 0 : index
    %31 = vector.load %arg8[%c0_22, %c0_23] : memref<1x256xf32, #tpu.memory_space<vmem>>, vector<1x256xf32>
    tpu.vector_store %arg8[%c0_22, %c0_23], %30 {strides = array<i32>} : memref<1x256xf32, #tpu.memory_space<vmem>>, vector<1x256xf32>,
    %c0_i32_24 = arith.constant 0 : i32
    %32 = arith.cmpi eq, %arg1, %c0_i32_24 : i32
    %33 = arith.extui %32 : i1 to i32
    %c0_i32_25 = arith.constant 0 : i32
    %34 = arith.cmpi ne, %33, %c0_i32_25 : i32
    scf.if %34 {
      %c0_26 = arith.constant 0 : index
      %c0_27 = arith.constant 0 : index
      %35 = vector.load %arg5[%c0_26, %c0_27] : memref<4x256xf32, #tpu.memory_space<vmem>>, vector<4x256xf32>
      %cst_28 = arith.constant dense<0.000000e+00> : vector<4xf32>
      %36 = vector.multi_reduction <add>, %35, %cst_28 [1] : vector<4x256xf32> to vector<4xf32>
      %37 = vector.shape_cast %36 : vector<4xf32> to vector<4x1xf32>
      %c0_29 = arith.constant 0 : index
      %c0_30 = arith.constant 0 : index
      %38 = vector.load %arg6[%c0_29, %c0_30] : memref<4x256xf32, #tpu.memory_space<vmem>>, vector<4x256xf32>
      %cst_31 = arith.constant dense<0.000000e+00> : vector<4xf32>
      %39 = vector.multi_reduction <add>, %38, %cst_31 [1] : vector<4x256xf32> to vector<4xf32>
      %40 = vector.shape_cast %39 : vector<4xf32> to vector<4x1xf32>
      %c0_32 = arith.constant 0 : index
      %c0_33 = arith.constant 0 : index
      %41 = vector.load %arg7[%c0_32, %c0_33] : memref<4x256xf32, #tpu.memory_space<vmem>>, vector<4x256xf32>
      %cst_34 = arith.constant dense<0.000000e+00> : vector<4xf32>
      %42 = vector.multi_reduction <add>, %41, %cst_34 [1] : vector<4x256xf32> to vector<4xf32>
      %43 = vector.shape_cast %42 : vector<4xf32> to vector<4x1xf32>
      %cst_35 = arith.constant 2.000000e+00 : f32
      %44 = vector.broadcast %cst_35 : f32 to vector<4x1xf32>
      %45 = arith.mulf %44, %37 : vector<4x1xf32>
      %cst_36 = arith.constant 9.99999974E-6 : f32
      %46 = vector.broadcast %cst_36 : f32 to vector<4x1xf32>
      %47 = arith.addf %45, %46 : vector<4x1xf32>
      %48 = arith.addf %43, %40 : vector<4x1xf32>
      %cst_37 = arith.constant 9.99999974E-6 : f32
      %49 = vector.broadcast %cst_37 : f32 to vector<4x1xf32>
      %50 = arith.addf %48, %49 : vector<4x1xf32>
      %51 = arith.divf %47, %50 : vector<4x1xf32>
      %cst_38 = arith.constant 1.000000e+00 : f32
      %52 = vector.broadcast %cst_38 : f32 to vector<4x1xf32>
      %53 = arith.subf %52, %51 : vector<4x1xf32>
      %54 = tpu.iota {dimensions = array<i32: 0>} : vector<4x1xi32>
      %c0_i32_39 = arith.constant 0 : i32
      %55 = vector.broadcast %c0_i32_39 : i32 to vector<4x1xi32>
      %56 = arith.cmpi ne, %54, %55 : vector<4x1xi32>
      %cst_40 = arith.constant 0.000000e+00 : f32
      %57 = vector.broadcast %cst_40 : f32 to vector<4x1xf32>
      %58 = arith.select %56, %53, %57 : vector<4x1xi1>, vector<4x1xf32>
      %59 = vector.shape_cast %58 : vector<4x1xf32> to vector<1x4x1xf32>
      %cst_41 = arith.constant dense<0.000000e+00> : vector<1xf32>
      %60 = vector.multi_reduction <add>, %59, %cst_41 [1, 2] : vector<1x4x1xf32> to vector<1xf32>
      %61 = vector.shape_cast %60 : vector<1xf32> to vector<1x1x1xf32>
      %62 = vector.extract %61[0, 0, 0] : f32 from vector<1x1x1xf32>
      %c0_42 = arith.constant 0 : index
      %c0_43 = arith.constant 0 : index
      %63 = vector.load %arg8[%c0_42, %c0_43] : memref<1x256xf32, #tpu.memory_space<vmem>>, vector<1x256xf32>
      %64 = vector.shape_cast %63 : vector<1x256xf32> to vector<1x1x256xf32>
      %cst_44 = arith.constant dense<0.000000e+00> : vector<1xf32>
      %65 = vector.multi_reduction <add>, %64, %cst_44 [1, 2] : vector<1x1x256xf32> to vector<1xf32>
      %66 = vector.shape_cast %65 : vector<1xf32> to vector<1x1x1xf32>
      %67 = vector.extract %66[0, 0, 0] : f32 from vector<1x1x1xf32>
      %68 = vector.shape_cast %37 : vector<4x1xf32> to vector<1x4x1xf32>
      %cst_45 = arith.constant dense<0.000000e+00> : vector<1xf32>
      %69 = vector.multi_reduction <add>, %68, %cst_45 [1, 2] : vector<1x4x1xf32> to vector<1xf32>
      %70 = vector.shape_cast %69 : vector<1xf32> to vector<1x1x1xf32>
      %71 = vector.extract %70[0, 0, 0] : f32 from vector<1x1x1xf32>
      %72 = arith.subf %67, %71 : f32
      %cst_46 = arith.constant 5.000000e-01 : f32
      %73 = arith.mulf %cst_46, %62 : f32
      %cst_47 = arith.constant 0.166666672 : f32
      %74 = arith.mulf %73, %cst_47 : f32
      %cst_48 = arith.constant 5.000000e-01 : f32
      %75 = arith.mulf %cst_48, %72 : f32
      %cst_49 = arith.constant 0.001953125 : f32
      %76 = arith.mulf %75, %cst_49 : f32
      %77 = arith.addf %74, %76 : f32
      %78 = vector.broadcast %77 : f32 to vector<1x1x1xf32>
      %c0_50 = arith.constant 0 : index
      %c0_51 = arith.constant 0 : index
      %c0_52 = arith.constant 0 : index
      %79 = vector.load %arg4[%c0_50, %c0_51, %c0_52] : memref<1x1x1xf32, #tpu.memory_space<vmem>>, vector<1x1x1xf32>
      tpu.vector_store %arg4[%c0_50, %c0_51, %c0_52], %78 {strides = array<i32>} : memref<1x1x1xf32, #tpu.memory_space<vmem>>, vector<1x1x1xf32>,
    } else {
    }
    return
  }
  func.func @transform_0(%arg0: i32, %arg1: i32) -> (i32, i32, i32) {
    %c0_i32 = arith.constant 0 : i32
    %c0_i32_0 = arith.constant 0 : i32
    return %arg0, %c0_i32, %arg1 : i32, i32, i32
  }
  func.func @transform_1(%arg0: i32, %arg1: i32) -> (i32, i32, i32) {
    %c0_i32 = arith.constant 0 : i32
    %c0_i32_0 = arith.constant 0 : i32
    return %arg0, %c0_i32, %arg1 : i32, i32, i32
  }
  func.func @transform_2(%arg0: i32, %arg1: i32) -> (i32, i32, i32) {
    %c0_i32 = arith.constant 0 : i32
    %c0_i32_0 = arith.constant 0 : i32
    %c0_i32_1 = arith.constant 0 : i32
    return %arg0, %c0_i32, %c0_i32_0 : i32, i32, i32
  }
}

</mosaic_0001>

<llo_original>
// kernel: tpu_custom_call.1
$region0: #{tpu_custom_call.1}
  #allocation0 [shape = 'u32[]', space=smem, size = 0x4, offset = 0x4, fixed_abs, tag = 'smem constant byte address 0x4 - core index']
  #allocation1 [shape = 'u32[144,128]{1,0:T(1,128)}', space=vmem, size = 0x12000, scoped, tag = 'internal scratch']
  #allocation2 [shape = 'f32[4,256]{1,0:T(4,128)}', space=vmem, size = 0x1000, scoped, tag = 'scratch operand']
  #allocation3 [shape = 'f32[4,256]{1,0:T(4,128)}', space=vmem, size = 0x1000, scoped, tag = 'scratch operand']
  #allocation4 [shape = 'f32[4,256]{1,0:T(4,128)}', space=vmem, size = 0x1000, scoped, tag = 'scratch operand']
  #allocation5 [shape = 'f32[1,256]{1,0:T(1,128)}', space=vmem, size = 0x400, scoped, tag = 'scratch operand']
  %s0 = inlined_call_operand.hbm [shape: f32[2,4,256], index: 0, kind: input, shape index: {}]
  %s1 = inlined_call_operand.hbm [shape: f32[2,4,256], index: 1, kind: input, shape index: {}]
  %s2 = inlined_call_operand.vmem [shape: f32[2,1,1], index: 2, kind: output, shape index: {}]
  %s3 = sld [smem:[#allocation0]]
  $region57: #{tpu_custom_call.1} parent=0
    _
  %s5 = ssub.s32 1, %s3
  %s6 = scalar_select 0, %s5, %s3
  $region1: #{tpu_custom_call.1} parent=0
    #allocation6 [shape = 'u8[8192]{0}', space=vmem, size = 0x2000, scoped, tag = 'input window, operand 0']
    #allocation7 [shape = 's32[2]{0}', space=sflag, size = 0x8, scoped, tag = 'scoped memory for tpu_custom_call.1']
    #allocation8 [shape = 'u8[8192]{0}', space=vmem, size = 0x2000, scoped, tag = 'input window, operand 1']
    #allocation9 [shape = 's32[2]{0}', space=sflag, size = 0x8, scoped, tag = 'scoped memory for tpu_custom_call.1']
    %7 = vsyncpa [#allocation7], 0
    %s8 = scalar_lea.sflag [#allocation7], 1
    %9 = vsyncpa %s8, 0
    %10 = vsyncpa [#allocation9], 0
    %s11 = scalar_lea.sflag [#allocation9], 1
    %12 = vsyncpa %s11, 0
    loop: start=0, step=1, limit=4
    $region2: #{tpu_custom_call.1} parent=1 // loop_pre_header
      _
    $region3: #{tpu_custom_call.1} parent=1 // loop_header
      %s14 = sphi 0, %s18
      %p15 = scmp.ge.s32.totalorder %s14, 4
      %s21 = sphi 0, %s33
      %s22 = sphi 0, %s29
      %s23 = sphi 0, %s21
      %s24 = sphi 0, %s22
      %s25 = sphi 0, %s23
      %s26 = sphi 0, %s24
      %s38 = sphi 0, %s40
      %s41 = sphi 0, %s38
      %s42 = sphi 0, %s41
      %s58 = sphi 0, %s42
      %s66 = sphi 0, %s68
      %s69 = sphi 0, %s66
      %s70 = sphi 0, %s69
      %s86 = sphi 0, %s70
      %s92 = sphi 0, %s94
      %s95 = sphi 0, %s92
      %s96 = sphi 0, %s95
      %s112 = sphi 0, %s96
    $region4: #{tpu_custom_call.1} parent=1 // loop_header_branch
      %17 = sbr.rel (%p15) target = $region8
    $region5: #{tpu_custom_call.1} parent=1 // loop_body
      %s19 = ssub.s32 %s14, 1
      %s20 = ssub.s32 %s14, 2
      %s27 = sadd.s32 1, %s22
      %p28 = scmp.ge.s32.totalorder %s27, 1
      %s29 = scalar_select %p28, 0, %s27
      %s30 = sadd.s32 1, %s21
      %s31 = scalar_select %p28, %s30, %s21
      %p32 = scmp.ge.s32.totalorder %s31, 2
      %s33 = scalar_select %p32, 0, %s31
      %s34 = ssub.s32 %s21, %s33
      %s35 = ssub.s32 %s22, %s29
      %s36 = sor.u32 %s34, %s35
      %p37 = scmp.eq.s32.totalorder %s36, 0
      %s39 = sadd.s32 %s38, 1
      %s40 = scalar_select %p37, %s38, %s39
      %p43 = pneg %p37
      %p44 = scmp.eq.s32.totalorder %s14, 1
      %p45 = por %p43, %p44
      %p46 = scmp.ne.s32.totalorder %s38, %s41
      %p47 = scmp.eq.s32.totalorder %s14, 0
      %p48 = por %p46, %p47
      %p49 = scmp.ne.s32.totalorder %s38, %s41
      %p50 = scmp.eq.s32.totalorder %s19, 1
      %p51 = por %p49, %p50
      %p52 = scmp.ne.s32.totalorder %s41, %s42
      %p53 = scmp.eq.s32.totalorder %s19, 0
      %p54 = por %p52, %p53
      %p55 = scmp.ne.s32.totalorder %s41, %s42
      %p56 = scmp.eq.s32.totalorder %s20, 1
      %p57 = por %p55, %p56
      %p59 = scmp.ne.s32.totalorder %s42, %s58
      %p60 = scmp.eq.s32.totalorder %s20, 0
      %p61 = por %p59, %p60
      %s62 = ssub.s32 %s21, %s33
      %s63 = ssub.s32 %s22, %s29
      %s64 = sor.u32 %s62, %s63
      %p65 = scmp.eq.s32.totalorder %s64, 0
      %s67 = sadd.s32 %s66, 1
      %s68 = scalar_select %p65, %s66, %s67
      %p71 = pneg %p65
      %p72 = scmp.eq.s32.totalorder %s14, 1
      %p73 = por %p71, %p72
      %p74 = scmp.ne.s32.totalorder %s66, %s69
      %p75 = scmp.eq.s32.totalorder %s14, 0
      %p76 = por %p74, %p75
      %p77 = scmp.ne.s32.totalorder %s66, %s69
      %p78 = scmp.eq.s32.totalorder %s19, 1
      %p79 = por %p77, %p78
      %p80 = scmp.ne.s32.totalorder %s69, %s70
      %p81 = scmp.eq.s32.totalorder %s19, 0
      %p82 = por %p80, %p81
      %p83 = scmp.ne.s32.totalorder %s69, %s70
      %p84 = scmp.eq.s32.totalorder %s20, 1
      %p85 = por %p83, %p84
      %p87 = scmp.ne.s32.totalorder %s70, %s86
      %p88 = scmp.eq.s32.totalorder %s20, 0
      %p89 = por %p87, %p88
      %s90 = ssub.s32 %s21, %s33
      %p91 = scmp.eq.s32.totalorder %s90, 0
      %s93 = sadd.s32 %s92, 1
      %s94 = scalar_select %p91, %s92, %s93
      %p97 = pneg %p91
      %p98 = scmp.eq.s32.totalorder %s14, 1
      %p99 = por %p97, %p98
      %p100 = scmp.ne.s32.totalorder %s92, %s95
      %p101 = scmp.eq.s32.totalorder %s14, 0
      %p102 = por %p100, %p101
      %p103 = scmp.ne.s32.totalorder %s92, %s95
      %p104 = scmp.eq.s32.totalorder %s19, 1
      %p105 = por %p103, %p104
      %p106 = scmp.ne.s32.totalorder %s95, %s96
      %p107 = scmp.eq.s32.totalorder %s19, 0
      %p108 = por %p106, %p107
      %p109 = scmp.ne.s32.totalorder %s95, %s96
      %p110 = scmp.eq.s32.totalorder %s20, 1
      %p111 = por %p109, %p110
      %p113 = scmp.ne.s32.totalorder %s96, %s112
      %p114 = scmp.eq.s32.totalorder %s20, 0
      %p115 = por %p113, %p114
      %p116 = scmp.le.s32.totalorder 1, %s14
      %p117 = scmp.lt.s32.totalorder %s14, 3
      %p118 = pnand %p116, %p117
      %p119 = pneg %p118
      // Predicated region
      $region9: #{tpu_custom_call.1} parent=5 // pred_check
        _
      $region10: #{tpu_custom_call.1} parent=5 // pred_check_branch
        %121 = sbr.rel (%p118) target = $region12
      $region11: #{tpu_custom_call.1} parent=5 // pred_region
        %s122 = ssub.s32 %s14, 1
      $region12: #{tpu_custom_call.1} parent=5 // pred_fallthru
        _
      %p123 = scmp.lt.s32.totalorder %s14, 2
      // Predicated region
      $region13: #{tpu_custom_call.1} parent=5 // pred_check
        %p124 = pneg %p123
      $region14: #{tpu_custom_call.1} parent=5 // pred_check_branch
        %126 = sbr.rel (%p124) target = $region16
      $region15: #{tpu_custom_call.1} parent=5 // pred_region
        // Predicated region
        $region17: #{tpu_custom_call.1} parent=15 // pred_check
          %p127 = pneg %p48
        $region18: #{tpu_custom_call.1} parent=15 // pred_check_branch
          %129 = sbr.rel (%p127) target = $region20
        $region19: #{tpu_custom_call.1} parent=15 // pred_region
          %s130 = sand.u32 %s38, 1
          %s131 = scalar_lea.sflag [#allocation7], %s130
          %s132 = sand.u32 %s38, 1
          %s133 = smul.addr %s132, 8
          %s134 = scalar_lea.vmem [#allocation6], %s133
          %s135 = smul.u32 2, %s22
          %s137 = ssub.s32 128, 128
          %138 = vsyncadd %s131, %s137
          %s139 = smul.addr %s21, 2
          %s140 = sadd.s32 %s135, %s139
          %s141 = smul.addr %s140, 64
          %s142 = scalar_lea.hbm %s0, %s141
          %s144 = sshll.u32 %s134, 4
          %s145 = int_to_ptr.vmem [resolvable:$true] %s144
          %147 = dma.hbm_to_vmem [thread:$0]  %s142, 128, %s145, %s131
        $region20: #{tpu_custom_call.1} parent=15 // pred_fallthru
          _
        // Predicated region
        $region21: #{tpu_custom_call.1} parent=15 // pred_check
          %p148 = pneg %p76
        $region22: #{tpu_custom_call.1} parent=15 // pred_check_branch
          %150 = sbr.rel (%p148) target = $region24
        $region23: #{tpu_custom_call.1} parent=15 // pred_region
          %s151 = sand.u32 %s66, 1
          %s152 = scalar_lea.sflag [#allocation9], %s151
          %s153 = sand.u32 %s66, 1
          %s154 = smul.addr %s153, 8
          %s155 = scalar_lea.vmem [#allocation8], %s154
          %s156 = smul.u32 2, %s22
          %s158 = ssub.s32 128, 128
          %159 = vsyncadd %s152, %s158
          %s160 = smul.addr %s21, 2
          %s161 = sadd.s32 %s156, %s160
          %s162 = smul.addr %s161, 64
          %s163 = scalar_lea.hbm %s1, %s162
          %s165 = sshll.u32 %s155, 4
          %s166 = int_to_ptr.vmem [resolvable:$true] %s165
          %168 = dma.hbm_to_vmem [thread:$0]  %s163, 128, %s166, %s152
        $region24: #{tpu_custom_call.1} parent=15 // pred_fallthru
          _
      $region16: #{tpu_custom_call.1} parent=5 // pred_fallthru
        _
      %p169 = scmp.le.s32.totalorder 1, %s14
      %p170 = scmp.lt.s32.totalorder %s14, 3
      %p171 = pnand %p169, %p170
      %p172 = pneg %p171
      // Predicated region
      $region25: #{tpu_custom_call.1} parent=5 // pred_check
        _
      $region26: #{tpu_custom_call.1} parent=5 // pred_check_branch
        %174 = sbr.rel (%p171) target = $region28
      $region27: #{tpu_custom_call.1} parent=5 // pred_region
        %s175 = ssub.s32 %s14, 1
        %s176 = sand.u32 %s41, 1
        %s177 = scalar_lea.sflag [#allocation7], %s176
        %s178 = sand.u32 %s41, 1
        %s179 = smul.addr %s178, 8
        %s180 = scalar_lea.vmem [#allocation6], %s179
        // Predicated region
        $region29: #{tpu_custom_call.1} parent=27 // pred_check
          %p181 = pneg %p54
        $region30: #{tpu_custom_call.1} parent=27 // pred_check_branch
          %183 = sbr.rel (%p181) target = $region32
        $region31: #{tpu_custom_call.1} parent=27 // pred_region
          %184 = dma.done %s177, 128
        $region32: #{tpu_custom_call.1} parent=27 // pred_fallthru
          _
        %s185 = sand.u32 %s69, 1
        %s186 = scalar_lea.sflag [#allocation9], %s185
        %s187 = sand.u32 %s69, 1
        %s188 = smul.addr %s187, 8
        %s189 = scalar_lea.vmem [#allocation8], %s188
        // Predicated region
        $region33: #{tpu_custom_call.1} parent=27 // pred_check
          %p190 = pneg %p82
        $region34: #{tpu_custom_call.1} parent=27 // pred_check_branch
          %192 = sbr.rel (%p190) target = $region36
        $region35: #{tpu_custom_call.1} parent=27 // pred_region
          %193 = dma.done %s186, 128
        $region36: #{tpu_custom_call.1} parent=27 // pred_fallthru
          _
        %s194 = sand.u32 %s41, 1
        %s195 = scalar_lea.sflag [#allocation7], %s194
        %s196 = sand.u32 %s41, 1
        %s197 = smul.addr %s196, 8
        %s198 = scalar_lea.vmem [#allocation6], %s197
        %p199 = pneg %p54
        %p200 = pneg %p51
        %s201 = sand.u32 %s69, 1
        %s202 = scalar_lea.sflag [#allocation9], %s201
        %s203 = sand.u32 %s69, 1
        %s204 = smul.addr %s203, 8
        %s205 = scalar_lea.vmem [#allocation8], %s204
        %p206 = pneg %p82
        %p207 = pneg %p79
        %p208 = pneg %p108
        %p209 = pneg %p105
        %p210 = scmp.lt.s32.totalorder %s23, 1
        %s211 = scalar_select %p210, %s23, 1
        %s212 = scalar_lea.vmem %s2, %s211
        %s213 = smul.u32 2, %s24
        %s214 = smul.u32 2, %s24
        %p215 = scmp.lt.s32.totalorder %s23, 1
        %s216 = scalar_select %p215, %s23, 1
        %s217 = scalar_lea.vmem %s2, %s216
        %p218 = scmp.eq.s32.totalorder %s24, 0
        // Predicated region
        $region37: #{tpu_custom_call.1} parent=27 // pred_check
          %p219 = pneg %p218
        $region38: #{tpu_custom_call.1} parent=27 // pred_check_branch
          %221 = sbr.rel (%p219) target = $region40
        $region39: #{tpu_custom_call.1} parent=27 // pred_region
          %222 = vst [vmem:[#allocation2] sm:$0xff] 0.0
          %223 = vst [vmem:[#allocation3] sm:$0xff] 0.0
          %224 = vst [vmem:[#allocation4] sm:$0xff] 0.0
          %v225 = vlaneseq
          %vm226 = vcmp.ge.s32.totalorder %v225, 0
          %vm227 = vcmp.lt.s32.totalorder %v225, 256
          %vm228 = vmand %vm226, %vm227
          %229 = vst.msk [vmem:[#allocation5] sm:$0x3] %vm228, 0.0
        $region40: #{tpu_custom_call.1} parent=27 // pred_fallthru
          _
        %v230 = vld [vmem:[%s180] sm:$0xff]
        %v231 = vld [vmem:[%s189] sm:$0xff]
        %v232 = vld [vmem:[#allocation2] sm:$0xff]
        %v233 = vmul.f32 %v231, %v230
        %v234 = vadd.f32 %v232, %v233
        %235 = vst [vmem:[#allocation2] sm:$0xff] %v234
        %v236 = vld [vmem:[#allocation3] sm:$0xff]
        %v237 = vadd.f32 %v236, %v230
        %238 = vst [vmem:[#allocation3] sm:$0xff] %v237
        %v239 = vld [vmem:[#allocation4] sm:$0xff]
        %v240 = vadd.f32 %v239, %v231
        %241 = vst [vmem:[#allocation4] sm:$0xff] %v240
        %v243 = vcombine.high %v230, %v230
        %vm245 = vcmask 1043456
        %v246 = vsel %vm245, %v230, -inf
        %v247 = vrot.slane %v246, 4
        %v248 = vmax.f32 %v246, %v247
        %v249 = vrot.slane %v248, 2
        %v250 = vmax.f32 %v248, %v249
        %v251 = vrot.slane %v250, 1
        %v252 = vmax.f32 %v250, %v251
        %v253 = vsel %vm245, %v243, -inf
        %v254 = vrot.slane %v253, 4
        %v255 = vmax.f32 %v253, %v254
        %v256 = vrot.slane %v255, 2
        %v257 = vmax.f32 %v255, %v256
        %v258 = vrot.slane %v257, 1
        %v259 = vmax.f32 %v257, %v258
        %v262 = vcombine.low %v252, %v259
        %v264 = vsub.f32 %v230, %v262
        %v265 = vmul.f32 %v264, 1.442695
        %v266 = vpow.pop %v265
        %v268 = vcombine.high %v266, %v266
        %v270 = vsel %vm245, %v266, 0.0
        %v271 = vrot.slane %v270, 4
        %v272 = vadd.f32 %v270, %v271
        %v273 = vrot.slane %v272, 2
        %v274 = vadd.f32 %v272, %v273
        %v275 = vrot.slane %v274, 1
        %v276 = vadd.f32 %v274, %v275
        %v277 = vsel %vm245, %v268, 0.0
        %v278 = vrot.slane %v277, 4
        %v279 = vadd.f32 %v277, %v278
        %v280 = vrot.slane %v279, 2
        %v281 = vadd.f32 %v279, %v280
        %v282 = vrot.slane %v281, 1
        %v283 = vadd.f32 %v281, %v282
        %v284 = vlog2.pop %v276
        %v285 = vmul.f32 %v284, 0.6931472
        %v286 = vlog2.pop %v283
        %v287 = vmul.f32 %v286, 0.6931472
        %v288 = vadd.f32 %v252, %v285
        %v289 = vadd.f32 %v259, %v287
        %v291 = vcombine.high %v231, %v231
        %v293 = vsel %vm245, %v231, 0.0
        %v294 = vrot.slane %v293, 4
        %v295 = vadd.f32 %v293, %v294
        %v296 = vrot.slane %v295, 2
        %v297 = vadd.f32 %v295, %v296
        %v298 = vrot.slane %v297, 1
        %v299 = vadd.f32 %v297, %v298
        %v300 = vsel %vm245, %v291, 0.0
        %v301 = vrot.slane %v300, 4
        %v302 = vadd.f32 %v300, %v301
        %v303 = vrot.slane %v302, 2
        %v304 = vadd.f32 %v302, %v303
        %v305 = vrot.slane %v304, 1
        %v306 = vadd.f32 %v304, %v305
        %v307 = vld [vmem:[#allocation5] sm:$0x3]
        %v308 = vmul.f32 %v288, %v299
        %v309 = vmul.f32 %v289, %v306
        %v312 = vcombine.low %v308, %v309
        %v314 = vunpack.c.l.s4 1966171168
        %v315 = vunpack.c.0.s8 %v314
        %v316 = vlaneseq
        %v317 = vshrl.u32 %v316, 7
        %v318 = vsub.s32 %v315, %v317
        %v319 = vrot.slane %v312, %v318
        %v321 = vunpack.c.l.s4 1966171168
        %v322 = vunpack.c.0.s8 %v321
        %v323 = vlaneseq
        %v324 = vshrl.u32 %v323, 7
        %v325 = vsub.s32 %v322, %v324
        %v326 = vrot.slane %v319, %v325
        %v328 = vadd.f32 %v307, %v326
        %v329 = vlaneseq
        %vm330 = vcmp.ge.s32.totalorder %v329, 0
        %vm331 = vcmp.lt.s32.totalorder %v329, 256
        %vm332 = vmand %vm330, %vm331
        %333 = vst.msk [vmem:[#allocation5] sm:$0x3] %vm332, %v328
        // Predicated region
        $region41: #{tpu_custom_call.1} parent=27 // pred_check
          %p334 = pneg %p218
        $region42: #{tpu_custom_call.1} parent=27 // pred_check_branch
          %336 = sbr.rel (%p334) target = $region44
        $region43: #{tpu_custom_call.1} parent=27 // pred_region
          %v337 = vld [vmem:[#allocation2] sm:$0xff]
          %v339 = vcombine.high %v337, %v337
          %v341 = vsel %vm245, %v337, 0.0
          %v342 = vsel %vm245, %v339, 0.0
          %v343 = vadd.f32 %v341, %v342
          %344 = vadd.xlane.f32.xlu0 %v343
          %v345 = vpop.xlane.xlu0 %344
          %v346 = vld [vmem:[#allocation3] sm:$0xff]
          %v348 = vcombine.high %v346, %v346
          %v350 = vsel %vm245, %v346, 0.0
          %v351 = vsel %vm245, %v348, 0.0
          %v352 = vadd.f32 %v350, %v351
          %353 = vadd.xlane.f32.xlu0 %v352
          %v354 = vpop.xlane.xlu0 %353
          %v355 = vld [vmem:[#allocation4] sm:$0xff]
          %v357 = vcombine.high %v355, %v355
          %v359 = vsel %vm245, %v355, 0.0
          %v360 = vsel %vm245, %v357, 0.0
          %v361 = vadd.f32 %v359, %v360
          %362 = vadd.xlane.f32.xlu0 %v361
          %v363 = vpop.xlane.xlu0 %362
          %v364 = vmul.f32 %v345, 2.0
          %v365 = vadd.f32 %v364, 1e-05
          %v366 = vadd.f32 %v363, %v354
          %v367 = vadd.f32 %v366, 1e-05
          %v368 = vrcp.pop %v367
          %v369 = vmul.f32 %v365, %v368
          %v370 = vsub.f32 1.0, %v369
          %v371 = vlaneseq
          %v372 = vshrl.u32 %v371, 7
          %vm373 = vcmp.ne.s32.totalorder %v372, 0
          %v374 = vsel %vm373, %v370, 0.0
          %vm375 = vcmask 3072
          %v376 = vsel %vm375, %v374, 0.0
          %377 = vadd.xlane.f32.xlu0 %v376
          %v378 = vpop.xlane.xlu0 %377
          %v379 = vrot.slane %v378, 4
          %v380 = vadd.f32 %v378, %v379
          %v381 = vrot.slane %v380, 2
          %v382 = vadd.f32 %v380, %v381
          %v383 = vrot.slane %v382, 1
          %v384 = vadd.f32 %v382, %v383
          %s385 = vtos %v384
          %v386 = vld [vmem:[#allocation5] sm:$0x3]
          %v388 = vlaneseq
          %v389 = vshrl.u32 %v388, 7
          %v390 = vsub.s32 0, %v389
          %v391 = vrot.slane %v386, %v390
          %v392 = vlaneseq
          %v393 = vshrl.u32 %v392, 7
          %v394 = vsub.s32 1, %v393
          %v395 = vrot.slane %v386, %v394
          %vm398 = vcmask 1040384
          %v399 = vsel %vm398, %v391, 0.0
          %v400 = vsel %vm398, %v395, 0.0
          %v401 = vadd.f32 %v399, %v400
          %402 = vadd.xlane.f32.xlu0 %v401
          %v403 = vpop.xlane.xlu0 %402
          %v404 = vrot.slane %v403, 4
          %v405 = vadd.f32 %v403, %v404
          %v406 = vrot.slane %v405, 2
          %v407 = vadd.f32 %v405, %v406
          %v408 = vrot.slane %v407, 1
          %v409 = vadd.f32 %v407, %v408
          %s410 = vtos %v409
          %v411 = vsel %vm375, %v345, 0.0
          %412 = vadd.xlane.f32.xlu0 %v411
          %v413 = vpop.xlane.xlu0 %412
          %v414 = vrot.slane %v413, 4
          %v415 = vadd.f32 %v413, %v414
          %v416 = vrot.slane %v415, 2
          %v417 = vadd.f32 %v415, %v416
          %v418 = vrot.slane %v417, 1
          %v419 = vadd.f32 %v417, %v418
          %s420 = vtos %v419
          %s421 = ssub.f32 %s410, %s420
          %s422 = smul.f32 %s385, 0.5
          %s423 = smul.f32 %s422, 0.16666667
          %s424 = smul.f32 %s421, 0.5
          %s425 = smul.f32 %s424, 0.001953125
          %s426 = sadd.f32 %s423, %s425
          %v427 = vstv %s426
          %vm428 = vcmask 0
          %429 = vst.msk [vmem:[%s217] sm:$0x1] %vm428, %v427
        $region44: #{tpu_custom_call.1} parent=27 // pred_fallthru
          _
        %p430 = scmp.lt.s32.totalorder %s23, 1
        %s431 = scalar_select %p430, %s23, 1
        %s432 = scalar_lea.vmem %s2, %s431
        // Predicated region
        $region45: #{tpu_custom_call.1} parent=27 // pred_check
          %p433 = pneg %p105
        $region46: #{tpu_custom_call.1} parent=27 // pred_check_branch
          %435 = sbr.rel (%p433) target = $region48
        $region47: #{tpu_custom_call.1} parent=27 // pred_region
          _
        $region48: #{tpu_custom_call.1} parent=27 // pred_fallthru
          _
      $region28: #{tpu_custom_call.1} parent=5 // pred_fallthru
        _
      %p436 = scmp.le.s32.totalorder 2, %s14
      // Predicated region
      $region49: #{tpu_custom_call.1} parent=5 // pred_check
        %p437 = pneg %p436
      $region50: #{tpu_custom_call.1} parent=5 // pred_check_branch
        %439 = sbr.rel (%p437) target = $region52
      $region51: #{tpu_custom_call.1} parent=5 // pred_region
        %s440 = ssub.s32 %s14, 2
        // Predicated region
        $region53: #{tpu_custom_call.1} parent=51 // pred_check
          %p441 = pneg %p111
        $region54: #{tpu_custom_call.1} parent=51 // pred_check_branch
          %443 = sbr.rel (%p441) target = $region56
        $region55: #{tpu_custom_call.1} parent=51 // pred_region
          %p444 = scmp.lt.s32.totalorder %s25, 1
          %s445 = scalar_select %p444, %s25, 1
          %s446 = scalar_lea.vmem %s2, %s445
        $region56: #{tpu_custom_call.1} parent=51 // pred_fallthru
          _
      $region52: #{tpu_custom_call.1} parent=5 // pred_fallthru
        _
    $region6: #{tpu_custom_call.1} parent=1 // loop_footer
      %s18 = sadd.s32 1, %s14
    $region7: #{tpu_custom_call.1} parent=1 // loop_footer_branch
      %13 = sbr.rel target = $region3
    $region8: #{tpu_custom_call.1} parent=1 // loop_exit
      _
    %447 = vsyncpa [#allocation7], 1
    %s448 = scalar_lea.sflag [#allocation7], 1
    %449 = vsyncpa %s448, 1
    %450 = vsyncpa [#allocation9], 1
    %s451 = scalar_lea.sflag [#allocation9], 1
    %452 = vsyncpa %s451, 1

</llo_original>
